<compile_context>
chip_gen: v7x
topology: tpu7x:2x2x1
jax: 0.10.0
libtpu: 0.0.40
codegen_flags: <defaults>
</compile_context>

<pallas_src>
import functools

import jax
import jax.numpy as jnp
from jax.experimental import pallas as pl
from jax.experimental.pallas import tpu as pltpu


def _gram_kernel(x_ref, s_ref, xsum_ref):
    """Pass 1: accumulate S = x x^T and xsum = sum_n x for one (split, batch)."""
    @pl.when(pl.program_id(2) == 0)
    def _():
        s_ref[...] = jnp.zeros_like(s_ref)
        xsum_ref[...] = jnp.zeros_like(xsum_ref)

    x = x_ref[...]                                                  # (P, Tn)
    # Contraction over the lane dim of both operands -> one transpose of x,
    # one MXU matmul with a (P,P) output.
    s_ref[...] += jnp.einsum("pn,qn->pq", x, x,
                             preferred_element_type=jnp.float32)
    xsum_ref[...] += jnp.sum(x, axis=1, keepdims=True, dtype=jnp.float32)


def _apply_kernel(x_ref, g_ref, h_ref, out_ref):
    """Pass 2: out = relu(G_b @ x + h_b).

    G_b already folds node_k conv + Wg AV^T + BN affine + out conv + the
    residual identity; h_b folds all biases.  Output last dim is the N tile
    (>=128 lanes) -> unmasked lane-dense stores.
    """
    y = jnp.dot(g_ref[...], x_ref[...],
                preferred_element_type=jnp.float32) + h_ref[...]
    out_ref[...] = jnp.maximum(y, 0.0).astype(out_ref.dtype)


def _pick_tile_n(n, p, itemsize, budget_bytes=16 << 20):
    """Largest 128-multiple tile dividing N whose double-buffered in/out tiles
    stay within `budget_bytes` (keeps v7x's 64 MiB VMEM safe; takes bigger
    tiles when P is small / bf16 is used, which is the mem-bound regime)."""
    if n % 128 != 0:
        return n
    cap = max(128, budget_bytes // (4 * p * itemsize))
    cap = min(cap, 4096)
    tn = 128
    while tn * 2 <= cap and n % (tn * 2) == 0:
        tn *= 2
    return tn


def _vmem_limit(work_bytes):
    # Leave headroom: never request more than 48 MiB (v7x has 64 MiB physical
    # VMEM per TensorCore), never less than the default scoped limit.
    return int(min(48 << 20, max(16 << 20, 2 * work_bytes + (4 << 20))))


@functools.partial(jax.jit,
                   static_argnames=("tile_n", "compute_dtype", "out_dtype",
                                    "n_splits"))
def spatial_gcn(x_nchw, params, tile_n=None, compute_dtype=jnp.float32,
                out_dtype=jnp.float32, n_splits=None):
    b, p, h, w = x_nchw.shape
    n = h * w
    itemsize = jnp.dtype(compute_dtype).itemsize
    if tile_n is None:
        tile_n = _pick_tile_n(n, p, itemsize)
    assert n % tile_n == 0, "tile_n must divide H*W"
    nt = n // tile_n

    # Core-split of the streamed reduction for tiny batch: with B == 1 one
    # v7x TensorCore would otherwise idle for all of pass 1.
    if n_splits is None:
        n_splits = 2 if (b == 1 and nt % 2 == 0) else 1
    assert nt % n_splits == 0
    nt_ps = nt // n_splits

    # NCHW -> (B, P, N) is a pure reshape: N = lane dim, channels = sublanes.
    x_tok = x_nchw.reshape(b, p, n).astype(compute_dtype)

    # ---- pass 1: streamed Gram / row-sum reduction over N tiles ------------
    stat_work = (2 * p * tile_n * itemsize          # double-buffered x tile
                 + 2 * (p * p + p) * 4)             # double-buffered stats
    s_partial, xsum_partial = pl.pallas_call(
        _gram_kernel,
        grid=(n_splits, b, nt_ps),
        in_specs=[pl.BlockSpec((None, p, tile_n),
                               lambda si, bi, ti: (bi, 0, si * nt_ps + ti))],
        out_specs=(pl.BlockSpec((None, None, p, p),
                                lambda si, bi, ti: (si, bi, 0, 0)),
                   pl.BlockSpec((None, None, p, 1),
                                lambda si, bi, ti: (si, bi, 0, 0))),
        out_shape=(jax.ShapeDtypeStruct((n_splits, b, p, p), jnp.float32),
                   jax.ShapeDtypeStruct((n_splits, b, p, 1), jnp.float32)),
        compiler_params=pltpu.CompilerParams(
            dimension_semantics=("parallel", "parallel", "arbitrary"),
            vmem_limit_bytes=_vmem_limit(stat_work)),
        cost_estimate=pl.CostEstimate(
            flops=2 * b * n * p * p,
            transcendentals=0,
            bytes_accessed=b * p * n * itemsize
            + n_splits * b * (p * p + p) * 4),
    )(x_tok)

    # ---- finalize: parameter-sized algebra only (all f32) ------------------
    s = s_partial.sum(axis=0)                           # (B, P, P)
    xs = xsum_partial.sum(axis=0)[..., 0]               # (B, P)

    wk, wv, wq = params["wk"], params["wv"], params["wq"]       # (C, P)
    bk, bv, bq = params["bk"], params["bv"], params["bq"]       # (C,)
    fn = float(n)

    qx = jnp.einsum("ip,bp->bi", wq, xs)                # Wq @ xsum  (B, C)
    vx = jnp.einsum("ip,bp->bi", wv, xs)
    kx = jnp.einsum("ip,bp->bi", wk, xs)

    # logits[b,i,j] = sum_n q_i(n) v_j(n)
    logits = (jnp.einsum("biq,jq->bij", jnp.einsum("ip,bpq->biq", wq, s), wv)
              + qx[:, :, None] * bv[None, None, :]
              + bq[None, :, None] * vx[:, None, :]
              + fn * (bq[:, None] * bv[None, :])[None])
    # kouter[b,i,j] = sum_n k_i(n) k_j(n);   ksum[b,i] = sum_n k_i(n)
    kouter = (jnp.einsum("biq,jq->bij", jnp.einsum("ip,bpq->biq", wk, s), wk)
              + kx[:, :, None] * bk[None, None, :]
              + bk[None, :, None] * kx[:, None, :]
              + fn * (bk[:, None] * bk[None, :])[None])
    ksum = kx + fn * bk[None, :]                        # (B, C)

    av = jax.nn.softmax(logits, axis=-1)                # (B, C, C)
    m = jnp.einsum("ij,bcj->bic", params["wg"], av)     # M_b = Wg @ AV_b^T
    count = float(b * n)
    mean = jnp.einsum("bic,bc->i", m, ksum) / count                   # (C,)
    ex2 = jnp.einsum("bic,bcd,bid->i", m, kouter, m) / count
    var = jnp.maximum(ex2 - mean * mean, 0.0)           # clamp vs cancellation
    scale = params["gamma"] * jax.lax.rsqrt(var + 1e-5)
    shift = params["beta"] - mean * scale

    # Fold  relu(out_conv(BN(Wg AV^T (Wk x + bk))) + x)  =  relu(G_b x + h_b)
    a_b = jnp.einsum("pc,c,bcd->bpd", params["wout"], scale, m)        # (B,P,C)
    g_mat = jnp.einsum("bpc,cq->bpq", a_b, wk) \
        + jnp.eye(p, dtype=jnp.float32)[None]                          # (B,P,P)
    h_vec = (jnp.einsum("bpc,c->bp", a_b, bk)
             + (params["wout"] @ shift)[None]
             + params["bout"][None])[..., None]                        # (B,P,1)

    # ---- pass 2: fully parallel apply, lane-dense output -------------------
    out_itemsize = jnp.dtype(out_dtype).itemsize
    apply_work = (2 * p * tile_n * itemsize + 2 * p * tile_n * out_itemsize
                  + 2 * (p * p + p) * 4)
    out_tok = pl.pallas_call(
        _apply_kernel,
        grid=(b, nt),
        in_specs=[pl.BlockSpec((None, p, tile_n), lambda bi, ti: (bi, 0, ti)),
                  pl.BlockSpec((None, p, p), lambda bi, ti: (bi, 0, 0)),
                  pl.BlockSpec((None, p, 1), lambda bi, ti: (bi, 0, 0))],
        out_specs=pl.BlockSpec((None, p, tile_n), lambda bi, ti: (bi, 0, ti)),
        out_shape=jax.ShapeDtypeStruct((b, p, n), out_dtype),
        compiler_params=pltpu.CompilerParams(
            dimension_semantics=("parallel", "parallel"),
            vmem_limit_bytes=_vmem_limit(apply_work)),
        cost_estimate=pl.CostEstimate(
            flops=2 * b * p * p * n,
            transcendentals=0,
            bytes_accessed=b * p * n * (itemsize + out_itemsize)
            + b * (p * p + p) * 4),
    )(x_tok, g_mat.astype(compute_dtype), h_vec)

    return out_tok.reshape(b, p, h, w)


def spatial_gcn_ref(x_nchw, params):
    """Pure-JAX reference mirroring the PyTorch forward (training-mode BN)."""
    b, p, hh, ww = x_nchw.shape
    n = hh * ww
    x = x_nchw.reshape(b, p, n)                                  # (B, P, N)
    k = jnp.einsum("cp,bpn->bcn", params["wk"], x) + params["bk"][None, :, None]
    v = jnp.einsum("cp,bpn->bcn", params["wv"], x) + params["bv"][None, :, None]
    q = jnp.einsum("cp,bpn->bcn", params["wq"], x) + params["bq"][None, :, None]
    av = jax.nn.softmax(jnp.einsum("bin,bjn->bij", q, v), axis=-1)   # (B, C, C)
    av2 = jnp.einsum("bcn,bcd->bdn", k, av)                      # (k^T AV)^T
    avw = jnp.einsum("ij,bjn->bin", params["wg"], av2)           # conv_wg
    mean = avw.mean(axis=(0, 2))
    var = ((avw - mean[None, :, None]) ** 2).mean(axis=(0, 2))
    avw = (avw - mean[None, :, None]) / jnp.sqrt(var[None, :, None] + 1e-5)
    avw = avw * params["gamma"][None, :, None] + params["beta"][None, :, None]
    y = jnp.einsum("pc,bcn->bpn", params["wout"], avw) \
        + params["bout"][None, :, None] + x
    return jnp.maximum(y, 0.0).reshape(b, p, hh, ww)


def init_params(key, plane):
    """Synthetic parameters with the PyTorch module's shapes.

    node_{k,v,q}.weight (C,P,1,1) -> (C,P); conv_wg.weight (C,C,1) -> (C,C)
    (no bias); bn_wg gamma=1 / beta=0 (fresh-module defaults);
    out.weight (P,C,1,1) -> (P,C).
    """
    c = plane // 2
    ks = jax.random.split(key, 9)
    s = 0.1
    return dict(
        wk=s * jax.random.normal(ks[0], (c, plane), jnp.float32),
        bk=s * jax.random.normal(ks[1], (c,), jnp.float32),
        wv=s * jax.random.normal(ks[2], (c, plane), jnp.float32),
        bv=s * jax.random.normal(ks[3], (c,), jnp.float32),
        wq=s * jax.random.normal(ks[4], (c, plane), jnp.float32),
        bq=s * jax.random.normal(ks[5], (c,), jnp.float32),
        wg=s * jax.random.normal(ks[6], (c, c), jnp.float32),
        gamma=jnp.ones((c,), jnp.float32),
        beta=jnp.zeros((c,), jnp.float32),
        wout=s * jax.random.normal(ks[7], (plane, c), jnp.float32),
        bout=s * jax.random.normal(ks[8], (plane,), jnp.float32),
    )


if __name__ == "__main__":
    key = jax.random.PRNGKey(0)
    kx, kp = jax.random.split(key)

    b, plane, h, w = 2, 4, 16, 16        # x: (2, 4, 16, 16), inter_plane = 2
    x = jax.random.normal(kx, (b, plane, h, w), jnp.float32)
    params = init_params(kp, plane)
    ref = spatial_gcn_ref(x, params)

    # f32 path; tile_n=128 -> two N tiles per batch, so the streamed
    # cross-tile pass-1 accumulation and pass-2 pipelining are exercised.
    out = jax.block_until_ready(spatial_gcn(x, params, tile_n=128))
    assert out.shape == x.shape
    err = float(jnp.max(jnp.abs(out - ref)))
    assert err < 1e-3, f"f32 mismatch vs JAX reference: max abs err {err}"

    # bf16 matmul path (recommended on v6e/v7x); statistics / finalize stay f32.
    out_bf16 = jax.block_until_ready(
        spatial_gcn(x, params, tile_n=128, compute_dtype=jnp.bfloat16))
    err_bf16 = float(jnp.max(jnp.abs(out_bf16 - ref)))
    assert err_bf16 < 1e-1, f"bf16 mismatch vs JAX reference: max abs err {err_bf16}"

    # B == 1 exercises the 2-way core split of the pass-1 streamed reduction.
    x1 = x[:1]
    out1 = jax.block_until_ready(spatial_gcn(x1, params, tile_n=128))
    ref1 = spatial_gcn_ref(x1, params)
    err1 = float(jnp.max(jnp.abs(out1 - ref1)))
    assert err1 < 1e-3, f"core-split mismatch vs JAX reference: max abs err {err1}"

    print("KERNEL_OK")
</pallas_src>

<mosaic_0001>
module attributes {stable_mosaic.version = 11 : i64} {
  func.func @_gram_kernel(%arg0: i32, %arg1: i32, %arg2: i32, %arg3: memref<1x4x128xf32, #tpu.memory_space<vmem>>, %arg4: memref<1x1x4x4xf32, #tpu.memory_space<vmem>>, %arg5: memref<1x1x4x1xf32, #tpu.memory_space<vmem>>) attributes {dimension_semantics = [#tpu.dimension_semantics<parallel>, #tpu.dimension_semantics<parallel>, #tpu.dimension_semantics<arbitrary>], iteration_bounds = array<i64: 1, 2, 2>, scalar_prefetch = 0 : i64, scratch_operands = 0 : i64, tpu.core_type = #tpu.core_type<tc>, window_params = [{transform_indices = @transform_0, window_bounds = array<i64: 1, 4, 128>}, {transform_indices = @transform_1, window_bounds = array<i64: 1, 1, 4, 4>}, {transform_indices = @transform_2, window_bounds = array<i64: 1, 1, 4, 1>}]} {
    %c0_i32 = arith.constant 0 : i32
    %0 = arith.cmpi eq, %arg2, %c0_i32 : i32
    %1 = arith.extui %0 : i1 to i32
    %c0_i32_0 = arith.constant 0 : i32
    %2 = arith.cmpi ne, %1, %c0_i32_0 : i32
    scf.if %2 {
      %cst_20 = arith.constant 0.000000e+00 : f32
      %20 = vector.broadcast %cst_20 : f32 to vector<4x4xf32>
      %c0_21 = arith.constant 0 : index
      %c0_22 = arith.constant 0 : index
      %c0_23 = arith.constant 0 : index
      %c0_24 = arith.constant 0 : index
      %21 = vector.load %arg4[%c0_21, %c0_22, %c0_23, %c0_24] : memref<1x1x4x4xf32, #tpu.memory_space<vmem>>, vector<1x1x4x4xf32>
      %22 = vector.shape_cast %21 : vector<1x1x4x4xf32> to vector<4x4xf32>
      %23 = vector.shape_cast %20 : vector<4x4xf32> to vector<1x1x4x4xf32>
      tpu.vector_store %arg4[%c0_21, %c0_22, %c0_23, %c0_24], %23 {strides = array<i32>} : memref<1x1x4x4xf32, #tpu.memory_space<vmem>>, vector<1x1x4x4xf32>,
      %cst_25 = arith.constant 0.000000e+00 : f32
      %24 = vector.broadcast %cst_25 : f32 to vector<4x1xf32>
      %c0_26 = arith.constant 0 : index
      %c0_27 = arith.constant 0 : index
      %c0_28 = arith.constant 0 : index
      %c0_29 = arith.constant 0 : index
      %25 = vector.load %arg5[%c0_26, %c0_27, %c0_28, %c0_29] : memref<1x1x4x1xf32, #tpu.memory_space<vmem>>, vector<1x1x4x1xf32>
      %26 = vector.shape_cast %25 : vector<1x1x4x1xf32> to vector<4x1xf32>
      %27 = vector.shape_cast %24 : vector<4x1xf32> to vector<1x1x4x1xf32>
      tpu.vector_store %arg5[%c0_26, %c0_27, %c0_28, %c0_29], %27 {strides = array<i32>} : memref<1x1x4x1xf32, #tpu.memory_space<vmem>>, vector<1x1x4x1xf32>,
    } else {
    }
    %c0 = arith.constant 0 : index
    %c0_1 = arith.constant 0 : index
    %c0_2 = arith.constant 0 : index
    %3 = vector.load %arg3[%c0, %c0_1, %c0_2] : memref<1x4x128xf32, #tpu.memory_space<vmem>>, vector<1x4x128xf32>
    %4 = vector.shape_cast %3 : vector<1x4x128xf32> to vector<4x128xf32>
    %c0_3 = arith.constant 0 : index
    %c0_4 = arith.constant 0 : index
    %c0_5 = arith.constant 0 : index
    %c0_6 = arith.constant 0 : index
    %5 = vector.load %arg4[%c0_3, %c0_4, %c0_5, %c0_6] : memref<1x1x4x4xf32, #tpu.memory_space<vmem>>, vector<1x1x4x4xf32>
    %6 = vector.shape_cast %5 : vector<1x1x4x4xf32> to vector<4x4xf32>
    "tpu.trace_start"() <{level = 10 : i32, message = "pn,qn->pq"}> : () -> ()
    %cst = arith.constant dense<0.000000e+00> : vector<4x4xf32>
    %7 = tpu.matmul %4, %4, %cst {dimension_numbers = #tpu.dot_dimension_numbers<[1], [1], [0], [0], [0, 0, 1, 0], [], []>} : vector<4x128xf32>, vector<4x128xf32>, vector<4x4xf32> -> vector<4x4xf32>
    "tpu.trace_stop"() : () -> ()
    %8 = arith.addf %6, %7 : vector<4x4xf32>
    %c0_7 = arith.constant 0 : index
    %c0_8 = arith.constant 0 : index
    %c0_9 = arith.constant 0 : index
    %c0_10 = arith.constant 0 : index
    %9 = vector.load %arg4[%c0_7, %c0_8, %c0_9, %c0_10] : memref<1x1x4x4xf32, #tpu.memory_space<vmem>>, vector<1x1x4x4xf32>
    %10 = vector.shape_cast %9 : vector<1x1x4x4xf32> to vector<4x4xf32>
    %11 = vector.shape_cast %8 : vector<4x4xf32> to vector<1x1x4x4xf32>
    tpu.vector_store %arg4[%c0_7, %c0_8, %c0_9, %c0_10], %11 {strides = array<i32>} : memref<1x1x4x4xf32, #tpu.memory_space<vmem>>, vector<1x1x4x4xf32>,
    %c0_11 = arith.constant 0 : index
    %c0_12 = arith.constant 0 : index
    %c0_13 = arith.constant 0 : index
    %c0_14 = arith.constant 0 : index
    %12 = vector.load %arg5[%c0_11, %c0_12, %c0_13, %c0_14] : memref<1x1x4x1xf32, #tpu.memory_space<vmem>>, vector<1x1x4x1xf32>
    %13 = vector.shape_cast %12 : vector<1x1x4x1xf32> to vector<4x1xf32>
    %cst_15 = arith.constant dense<0.000000e+00> : vector<4xf32>
    %14 = vector.multi_reduction <add>, %4, %cst_15 [1] : vector<4x128xf32> to vector<4xf32>
    %15 = vector.shape_cast %14 : vector<4xf32> to vector<4x1xf32>
    %16 = arith.addf %13, %15 : vector<4x1xf32>
    %c0_16 = arith.constant 0 : index
    %c0_17 = arith.constant 0 : index
    %c0_18 = arith.constant 0 : index
    %c0_19 = arith.constant 0 : index
    %17 = vector.load %arg5[%c0_16, %c0_17, %c0_18, %c0_19] : memref<1x1x4x1xf32, #tpu.memory_space<vmem>>, vector<1x1x4x1xf32>
    %18 = vector.shape_cast %17 : vector<1x1x4x1xf32> to vector<4x1xf32>
    %19 = vector.shape_cast %16 : vector<4x1xf32> to vector<1x1x4x1xf32>
    tpu.vector_store %arg5[%c0_16, %c0_17, %c0_18, %c0_19], %19 {strides = array<i32>} : memref<1x1x4x1xf32, #tpu.memory_space<vmem>>, vector<1x1x4x1xf32>,
    return
  }
  func.func @transform_0(%arg0: i32, %arg1: i32, %arg2: i32) -> (i32, i32, i32) {
    %c2_i32 = arith.constant 2 : i32
    %0 = arith.muli %arg0, %c2_i32 : i32
    %1 = arith.addi %0, %arg2 : i32
    %c0_i32 = arith.constant 0 : i32
    %c0_i32_0 = arith.constant 0 : i32
    return %arg1, %c0_i32, %1 : i32, i32, i32
  }
  func.func @transform_1(%arg0: i32, %arg1: i32, %arg2: i32) -> (i32, i32, i32, i32) {
    %c0_i32 = arith.constant 0 : i32
    %c0_i32_0 = arith.constant 0 : i32
    %c0_i32_1 = arith.constant 0 : i32
    return %arg0, %arg1, %c0_i32, %c0_i32_0 : i32, i32, i32, i32
  }
  func.func @transform_2(%arg0: i32, %arg1: i32, %arg2: i32) -> (i32, i32, i32, i32) {
    %c0_i32 = arith.constant 0 : i32
    %c0_i32_0 = arith.constant 0 : i32
    %c0_i32_1 = arith.constant 0 : i32
    return %arg0, %arg1, %c0_i32, %c0_i32_0 : i32, i32, i32, i32
  }
}

module attributes {stable_mosaic.version = 11 : i64} {
  func.func @_apply_kernel(%arg0: i32, %arg1: i32, %arg2: memref<1x4x128xf32, #tpu.memory_space<vmem>>, %arg3: memref<1x4x4xf32, #tpu.memory_space<vmem>>, %arg4: memref<1x4x1xf32, #tpu.memory_space<vmem>>, %arg5: memref<1x4x128xf32, #tpu.memory_space<vmem>>) attributes {dimension_semantics = [#tpu.dimension_semantics<parallel>, #tpu.dimension_semantics<parallel>], iteration_bounds = array<i64: 2, 2>, scalar_prefetch = 0 : i64, scratch_operands = 0 : i64, tpu.core_type = #tpu.core_type<tc>, window_params = [{transform_indices = @transform_0, window_bounds = array<i64: 1, 4, 128>}, {transform_indices = @transform_1, window_bounds = array<i64: 1, 4, 4>}, {transform_indices = @transform_2, window_bounds = array<i64: 1, 4, 1>}, {transform_indices = @transform_3, window_bounds = array<i64: 1, 4, 128>}]} {
    %c0 = arith.constant 0 : index
    %c0_0 = arith.constant 0 : index
    %c0_1 = arith.constant 0 : index
    %0 = vector.load %arg3[%c0, %c0_0, %c0_1] : memref<1x4x4xf32, #tpu.memory_space<vmem>>, vector<1x4x4xf32>
    %1 = vector.shape_cast %0 : vector<1x4x4xf32> to vector<4x4xf32>
    %c0_2 = arith.constant 0 : index
    %c0_3 = arith.constant 0 : index
    %c0_4 = arith.constant 0 : index
    %2 = vector.load %arg2[%c0_2, %c0_3, %c0_4] : memref<1x4x128xf32, #tpu.memory_space<vmem>>, vector<1x4x128xf32>
    %3 = vector.shape_cast %2 : vector<1x4x128xf32> to vector<4x128xf32>
    %cst = arith.constant dense<0.000000e+00> : vector<4x128xf32>
    %4 = tpu.matmul %1, %3, %cst {dimension_numbers = #tpu.dot_dimension_numbers<[1], [0], [0], [1], [0, 0, 1, 1], [], []>} : vector<4x4xf32>, vector<4x128xf32>, vector<4x128xf32> -> vector<4x128xf32>
    %c0_5 = arith.constant 0 : index
    %c0_6 = arith.constant 0 : index
    %c0_7 = arith.constant 0 : index
    %5 = vector.load %arg4[%c0_5, %c0_6, %c0_7] : memref<1x4x1xf32, #tpu.memory_space<vmem>>, vector<1x4x1xf32>
    %6 = vector.shape_cast %5 : vector<1x4x1xf32> to vector<4x1xf32>
    %7 = vector.broadcast %6 : vector<4x1xf32> to vector<4x128xf32>
    %8 = arith.addf %4, %7 : vector<4x128xf32>
    %cst_8 = arith.constant 0.000000e+00 : f32
    %9 = vector.broadcast %cst_8 : f32 to vector<4x128xf32>
    %10 = arith.maximumf %8, %9 : vector<4x128xf32>
    %c0_9 = arith.constant 0 : index
    %c0_10 = arith.constant 0 : index
    %c0_11 = arith.constant 0 : index
    %11 = vector.load %arg5[%c0_9, %c0_10, %c0_11] : memref<1x4x128xf32, #tpu.memory_space<vmem>>, vector<1x4x128xf32>
    %12 = vector.shape_cast %11 : vector<1x4x128xf32> to vector<4x128xf32>
    %13 = vector.shape_cast %10 : vector<4x128xf32> to vector<1x4x128xf32>
    tpu.vector_store %arg5[%c0_9, %c0_10, %c0_11], %13 {strides = array<i32>} : memref<1x4x128xf32, #tpu.memory_space<vmem>>, vector<1x4x128xf32>,
    return
  }
  func.func @transform_0(%arg0: i32, %arg1: i32) -> (i32, i32, i32) {
    %c0_i32 = arith.constant 0 : i32
    %c0_i32_0 = arith.constant 0 : i32
    return %arg0, %c0_i32, %arg1 : i32, i32, i32
  }
  func.func @transform_1(%arg0: i32, %arg1: i32) -> (i32, i32, i32) {
    %c0_i32 = arith.constant 0 : i32
    %c0_i32_0 = arith.constant 0 : i32
    %c0_i32_1 = arith.constant 0 : i32
    return %arg0, %c0_i32, %c0_i32_0 : i32, i32, i32
  }
  func.func @transform_2(%arg0: i32, %arg1: i32) -> (i32, i32, i32) {
    %c0_i32 = arith.constant 0 : i32
    %c0_i32_0 = arith.constant 0 : i32
    %c0_i32_1 = arith.constant 0 : i32
    return %arg0, %c0_i32, %c0_i32_0 : i32, i32, i32
  }
  func.func @transform_3(%arg0: i32, %arg1: i32) -> (i32, i32, i32) {
    %c0_i32 = arith.constant 0 : i32
    %c0_i32_0 = arith.constant 0 : i32
    return %arg0, %c0_i32, %arg1 : i32, i32, i32
  }
}

</mosaic_0001>

<llo_original>
// kernel: spatial_gcn.2
$region0: #{spatial_gcn.2}
  #allocation0 [shape = 'u32[]', space=smem, size = 0x4, offset = 0x4, fixed_abs, tag = 'smem constant byte address 0x4 - core index']
  #allocation1 [shape = 'u32[144,128]{1,0:T(1,128)}', space=vmem, size = 0x12000, scoped, tag = 'internal scratch']
  %s0 = inlined_call_operand.vmem [shape: f32[2,4,256], index: 0, kind: input, shape index: {}]
  %s1 = inlined_call_operand.vmem [shape: f32[1,2,4,4], index: 1, kind: output, shape index: {0}]
  %s2 = inlined_call_operand.vmem [shape: f32[1,2,4,1], index: 2, kind: output, shape index: {1}]
  %3 = xla_tuple %s1, %s2
  %s4 = sld [smem:[#allocation0]]
  $region49: #{spatial_gcn.2} parent=0
    _
  %s6 = ssub.s32 1, %s4
  %s7 = scalar_select 0, %s6, %s4
  loop: start=0, step=1, limit=6
  $region2: #{spatial_gcn.2} parent=0 // loop_pre_header
    _
  $region3: #{spatial_gcn.2} parent=0 // loop_header
    %s9 = sphi 0, %s13
    %p10 = scmp.ge.s32.totalorder %s9, 6
    %s16 = sphi 0, %s35
    %s17 = sphi 0, %s31
    %s18 = sphi 0, %s27
    %s19 = sphi 0, %s16
    %s20 = sphi 0, %s17
    %s21 = sphi 0, %s18
    %s22 = sphi 0, %s19
    %s23 = sphi 0, %s20
    %s24 = sphi 0, %s21
    %s44 = sphi 0, %s46
    %s47 = sphi 0, %s44
    %s48 = sphi 0, %s47
    %s64 = sphi 0, %s48
    %s72 = sphi 0, %s74
    %s75 = sphi 0, %s72
    %s76 = sphi 0, %s75
    %s92 = sphi 0, %s76
    %s100 = sphi 0, %s102
    %s103 = sphi 0, %s100
    %s104 = sphi 0, %s103
    %s120 = sphi 0, %s104
  $region4: #{spatial_gcn.2} parent=0 // loop_header_branch
    %12 = sbr.rel (%p10) target = $region8
  $region5: #{spatial_gcn.2} parent=0 // loop_body
    %s14 = ssub.s32 %s9, 1
    %s15 = ssub.s32 %s9, 2
    %s25 = sadd.s32 1, %s18
    %p26 = scmp.ge.s32.totalorder %s25, 2
    %s27 = scalar_select %p26, 0, %s25
    %s28 = sadd.s32 1, %s17
    %s29 = scalar_select %p26, %s28, %s17
    %p30 = scmp.ge.s32.totalorder %s29, 2
    %s31 = scalar_select %p30, 0, %s29
    %s32 = sadd.s32 1, %s16
    %s33 = scalar_select %p30, %s32, %s16
    %p34 = scmp.ge.s32.totalorder %s33, 1
    %s35 = scalar_select %p34, 0, %s33
    %s36 = smul.u32 %s16, 2
    %s37 = sadd.s32 %s36, %s18
    %s38 = smul.u32 %s35, 2
    %s39 = sadd.s32 %s38, %s27
    %s40 = ssub.s32 %s17, %s31
    %s41 = ssub.s32 %s37, %s39
    %s42 = sor.u32 %s40, %s41
    %p43 = scmp.eq.s32.totalorder %s42, 0
    %s45 = sadd.s32 %s44, 1
    %s46 = scalar_select %p43, %s44, %s45
    %p49 = pneg %p43
    %p50 = scmp.eq.s32.totalorder %s9, 3
    %p51 = por %p49, %p50
    %p52 = scmp.ne.s32.totalorder %s44, %s47
    %p53 = scmp.eq.s32.totalorder %s9, 0
    %p54 = por %p52, %p53
    %p55 = scmp.ne.s32.totalorder %s44, %s47
    %p56 = scmp.eq.s32.totalorder %s14, 3
    %p57 = por %p55, %p56
    %p58 = scmp.ne.s32.totalorder %s47, %s48
    %p59 = scmp.eq.s32.totalorder %s14, 0
    %p60 = por %p58, %p59
    %p61 = scmp.ne.s32.totalorder %s47, %s48
    %p62 = scmp.eq.s32.totalorder %s15, 3
    %p63 = por %p61, %p62
    %p65 = scmp.ne.s32.totalorder %s48, %s64
    %p66 = scmp.eq.s32.totalorder %s15, 0
    %p67 = por %p65, %p66
    %s68 = ssub.s32 %s16, %s35
    %s69 = ssub.s32 %s17, %s31
    %s70 = sor.u32 %s68, %s69
    %p71 = scmp.eq.s32.totalorder %s70, 0
    %s73 = sadd.s32 %s72, 1
    %s74 = scalar_select %p71, %s72, %s73
    %p77 = pneg %p71
    %p78 = scmp.eq.s32.totalorder %s9, 3
    %p79 = por %p77, %p78
    %p80 = scmp.ne.s32.totalorder %s72, %s75
    %p81 = scmp.eq.s32.totalorder %s9, 0
    %p82 = por %p80, %p81
    %p83 = scmp.ne.s32.totalorder %s72, %s75
    %p84 = scmp.eq.s32.totalorder %s14, 3
    %p85 = por %p83, %p84
    %p86 = scmp.ne.s32.totalorder %s75, %s76
    %p87 = scmp.eq.s32.totalorder %s14, 0
    %p88 = por %p86, %p87
    %p89 = scmp.ne.s32.totalorder %s75, %s76
    %p90 = scmp.eq.s32.totalorder %s15, 3
    %p91 = por %p89, %p90
    %p93 = scmp.ne.s32.totalorder %s76, %s92
    %p94 = scmp.eq.s32.totalorder %s15, 0
    %p95 = por %p93, %p94
    %s96 = ssub.s32 %s16, %s35
    %s97 = ssub.s32 %s17, %s31
    %s98 = sor.u32 %s96, %s97
    %p99 = scmp.eq.s32.totalorder %s98, 0
    %s101 = sadd.s32 %s100, 1
    %s102 = scalar_select %p99, %s100, %s101
    %p105 = pneg %p99
    %p106 = scmp.eq.s32.totalorder %s9, 3
    %p107 = por %p105, %p106
    %p108 = scmp.ne.s32.totalorder %s100, %s103
    %p109 = scmp.eq.s32.totalorder %s9, 0
    %p110 = por %p108, %p109
    %p111 = scmp.ne.s32.totalorder %s100, %s103
    %p112 = scmp.eq.s32.totalorder %s14, 3
    %p113 = por %p111, %p112
    %p114 = scmp.ne.s32.totalorder %s103, %s104
    %p115 = scmp.eq.s32.totalorder %s14, 0
    %p116 = por %p114, %p115
    %p117 = scmp.ne.s32.totalorder %s103, %s104
    %p118 = scmp.eq.s32.totalorder %s15, 3
    %p119 = por %p117, %p118
    %p121 = scmp.ne.s32.totalorder %s104, %s120
    %p122 = scmp.eq.s32.totalorder %s15, 0
    %p123 = por %p121, %p122
    %p124 = scmp.le.s32.totalorder 1, %s9
    %p125 = scmp.lt.s32.totalorder %s9, 5
    %p126 = pnand %p124, %p125
    %p127 = pneg %p126
    // Predicated region
    $region9: #{spatial_gcn.2} parent=5 // pred_check
      _
    $region10: #{spatial_gcn.2} parent=5 // pred_check_branch
      %129 = sbr.rel (%p126) target = $region12
    $region11: #{spatial_gcn.2} parent=5 // pred_region
      %s130 = ssub.s32 %s9, 1
    $region12: #{spatial_gcn.2} parent=5 // pred_fallthru
      _
    %p131 = scmp.lt.s32.totalorder %s9, 4
    // Predicated region
    $region13: #{spatial_gcn.2} parent=5 // pred_check
      %p132 = pneg %p131
    $region14: #{spatial_gcn.2} parent=5 // pred_check_branch
      %134 = sbr.rel (%p132) target = $region16
    $region15: #{spatial_gcn.2} parent=5 // pred_region
      // Predicated region
      $region17: #{spatial_gcn.2} parent=15 // pred_check
        %p135 = pneg %p54
      $region18: #{spatial_gcn.2} parent=15 // pred_check_branch
        %137 = sbr.rel (%p135) target = $region20
      $region19: #{spatial_gcn.2} parent=15 // pred_region
        %s138 = smul.u32 %s16, 2
        %s139 = sadd.s32 %s138, %s18
        %p140 = scmp.lt.s32.totalorder %s17, 1
        %s141 = scalar_select %p140, %s17, 1
        %p142 = scmp.lt.s32.totalorder %s139, 1
        %s143 = scalar_select %p142, %s139, 1
        %s144 = smul.addr %s141, 2
        %s145 = sadd.s32 %s143, %s144
        %s146 = smul.addr %s145, 4
        %s147 = scalar_lea.vmem %s0, %s146
        %s148 = smul.u32 %s16, 2
        %s149 = sadd.s32 %s148, %s18
      $region20: #{spatial_gcn.2} parent=15 // pred_fallthru
        _
    $region16: #{spatial_gcn.2} parent=5 // pred_fallthru
      _
    %p150 = scmp.le.s32.totalorder 1, %s9
    %p151 = scmp.lt.s32.totalorder %s9, 5
    %p152 = pnand %p150, %p151
    %p153 = pneg %p152
    // Predicated region
    $region21: #{spatial_gcn.2} parent=5 // pred_check
      _
    $region22: #{spatial_gcn.2} parent=5 // pred_check_branch
      %155 = sbr.rel (%p152) target = $region24
    $region23: #{spatial_gcn.2} parent=5 // pred_region
      %s156 = ssub.s32 %s9, 1
      %s157 = smul.u32 %s19, 2
      %s158 = sadd.s32 %s157, %s21
      %p159 = scmp.lt.s32.totalorder %s20, 1
      %s160 = scalar_select %p159, %s20, 1
      %p161 = scmp.lt.s32.totalorder %s158, 1
      %s162 = scalar_select %p161, %s158, 1
      %s163 = smul.addr %s160, 2
      %s164 = sadd.s32 %s162, %s163
      %s165 = smul.addr %s164, 4
      %s166 = scalar_lea.vmem %s0, %s165
      %p167 = pneg %p60
      %p168 = pneg %p57
      %p169 = pneg %p88
      %p170 = pneg %p85
      %p171 = scmp.lt.s32.totalorder %s19, 0
      %s172 = scalar_select %p171, %s19, 0
      %p173 = scmp.lt.s32.totalorder %s20, 1
      %s174 = scalar_select %p173, %s20, 1
      %s175 = smul.addr %s172, 2
      %s176 = sadd.s32 %s174, %s175
      %s177 = smul.addr %s176, 4
      %s178 = scalar_lea.vmem %s1, %s177
      %p179 = pneg %p116
      %p180 = pneg %p113
      %p181 = scmp.lt.s32.totalorder %s19, 0
      %s182 = scalar_select %p181, %s19, 0
      %p183 = scmp.lt.s32.totalorder %s20, 1
      %s184 = scalar_select %p183, %s20, 1
      %s185 = smul.addr %s182, 2
      %s186 = sadd.s32 %s184, %s185
      %s187 = smul.addr %s186, 4
      %s188 = scalar_lea.vmem %s2, %s187
      %s189 = smul.u32 %s19, 2
      %s190 = sadd.s32 %s189, %s21
      %p191 = scmp.lt.s32.totalorder %s20, 1
      %s192 = scalar_select %p191, %s20, 1
      %p193 = scmp.lt.s32.totalorder %s190, 1
      %s194 = scalar_select %p193, %s190, 1
      %s195 = smul.addr %s192, 2
      %s196 = sadd.s32 %s194, %s195
      %s197 = smul.addr %s196, 4
      %s198 = scalar_lea.vmem %s0, %s197
      %s199 = smul.u32 %s19, 2
      %s200 = sadd.s32 %s199, %s21
      %p201 = scmp.lt.s32.totalorder %s19, 0
      %s202 = scalar_select %p201, %s19, 0
      %p203 = scmp.lt.s32.totalorder %s20, 1
      %s204 = scalar_select %p203, %s20, 1
      %s205 = smul.addr %s202, 2
      %s206 = sadd.s32 %s204, %s205
      %s207 = smul.addr %s206, 4
      %s208 = scalar_lea.vmem %s1, %s207
      %p209 = scmp.lt.s32.totalorder %s19, 0
      %s210 = scalar_select %p209, %s19, 0
      %p211 = scmp.lt.s32.totalorder %s20, 1
      %s212 = scalar_select %p211, %s20, 1
      %s213 = smul.addr %s210, 2
      %s214 = sadd.s32 %s212, %s213
      %s215 = smul.addr %s214, 4
      %s216 = scalar_lea.vmem %s2, %s215
      %p217 = scmp.eq.s32.totalorder %s21, 0
      // Predicated region
      $region25: #{spatial_gcn.2} parent=23 // pred_check
        %p218 = pneg %p217
      $region26: #{spatial_gcn.2} parent=23 // pred_check_branch
        %220 = sbr.rel (%p218) target = $region28
      $region27: #{spatial_gcn.2} parent=23 // pred_region
        %vm221 = vcmask 27648
        %222 = vst.msk [vmem:[%s208] sm:$0xf] %vm221, 0.0
        %vm223 = vcmask 3072
        %224 = vst.msk [vmem:[%s216] sm:$0xf] %vm223, 0.0
      $region28: #{spatial_gcn.2} parent=23 // pred_fallthru
        _
      %v225 = vld [vmem:[%s198] sm:$0xf]
      %v226 = vld [vmem:[%s208] sm:$0xf]
      %227 = vmatprep.subr.mxu0 0.0
      %228 = vmatpush1.xpose.msra.mxu0 %v225
      %229 = vmatprep.subr.mxu0 0.0
      %230 = vmatpush1.xpose.msra.mxu0 0.0
      %231 = vmatprep.subr.mxu0 0.0
      %232 = vmatpush1.xpose.msra.mxu0 0.0
      %233 = vmatprep.subr.mxu0 0.0
      %234 = vmatpush1.xpose.msra.mxu0 0.0
      %235 = vmatprep.subr.mxu0 0.0
      %236 = vmatpush1.xpose.msra.mxu0 0.0
      %237 = vmatprep.subr.mxu0 0.0
      %238 = vmatpush1.xpose.msra.mxu0 0.0
      %239 = vmatprep.subr.mxu0 0.0
      %240 = vmatpush1.xpose.msra.mxu0 0.0
      %241 = vmatprep.subr.mxu0 0.0
      %242 = vmatpush1.xpose.msra.mxu0 0.0
      %243 = vmatprep.subr.mxu0 0.0
      %244 = vmatpush1.xpose.msra.mxu0 0.0
      %245 = vmatprep.subr.mxu0 0.0
      %246 = vmatpush1.xpose.msra.mxu0 0.0
      %247 = vmatprep.subr.mxu0 0.0
      %248 = vmatpush1.xpose.msra.mxu0 0.0
      %249 = vmatprep.subr.mxu0 0.0
      %250 = vmatpush1.xpose.msra.mxu0 0.0
      %251 = vmatprep.subr.mxu0 0.0
      %252 = vmatpush1.xpose.msra.mxu0 0.0
      %253 = vmatprep.subr.mxu0 0.0
      %254 = vmatpush1.xpose.msra.mxu0 0.0
      %255 = vmatprep.subr.mxu0 0.0
      %256 = vmatpush1.xpose.msra.mxu0 0.0
      %257 = vmatprep.subr.mxu0 0.0
      %258 = vmatpush1.xpose.msra.mxu0 0.0
      %259 = vmatprep.subr.mxu0 0.0
      %260 = vmatpush1.xpose.msra.mxu0 0.0
      %261 = vmatprep.subr.mxu0 0.0
      %262 = vmatpush1.xpose.msra.mxu0 0.0
      %263 = vmatprep.subr.mxu0 0.0
      %264 = vmatpush1.xpose.msra.mxu0 0.0
      %265 = vmatprep.subr.mxu0 0.0
      %266 = vmatpush1.xpose.msra.mxu0 0.0
      %267 = vmatprep.subr.mxu0 0.0
      %268 = vmatpush1.xpose.msra.mxu0 0.0
      %269 = vmatprep.subr.mxu0 0.0
      %270 = vmatpush1.xpose.msra.mxu0 0.0
      %271 = vmatprep.subr.mxu0 0.0
      %272 = vmatpush1.xpose.msra.mxu0 0.0
      %273 = vmatprep.subr.mxu0 0.0
      %274 = vmatpush1.xpose.msra.mxu0 0.0
      %275 = vmatprep.subr.mxu0 0.0
      %276 = vmatpush1.xpose.msra.mxu0 0.0
      %277 = vmatprep.subr.mxu0 0.0
      %278 = vmatpush1.xpose.msra.mxu0 0.0
      %279 = vmatprep.subr.mxu0 0.0
      %280 = vmatpush1.xpose.msra.mxu0 0.0
      %281 = vmatprep.subr.mxu0 0.0
      %282 = vmatpush1.xpose.msra.mxu0 0.0
      %283 = vmatprep.subr.mxu0 0.0
      %284 = vmatpush1.xpose.msra.mxu0 0.0
      %285 = vmatprep.subr.mxu0 0.0
      %286 = vmatpush1.xpose.msra.mxu0 0.0
      %287 = vmatprep.subr.mxu0 0.0
      %288 = vmatpush1.xpose.msra.mxu0 0.0
      %289 = vmatprep.subr.mxu0 0.0
      %290 = vmatpush1.xpose.msra.mxu0 0.0
      %291 = vmatprep.mubr.f32.mxu0 0.0
      %292 = vmatmul.mubr.f32.gmra.mrb[0].mxu0 %v225
      %v293 = vpop.f32.mrb[0].mxu0
      %v294 = vadd.f32 0.0, %v293
      %v295 = vpop.f32.mrb[0].mxu0
      %296 = vdwg.mxu0
      %v297 = vadd.f32 %v226, %v294
      %vm298 = vcmask 27648
      %299 = vst.msk [vmem:[%s208] sm:$0xf] %vm298, %v297
      %v300 = vld [vmem:[%s216] sm:$0xf]
      %vm301 = vcmask 1043456
      %v302 = vsel %vm301, %v225, 0.0
      %303 = vadd.xlane.f32.xlu0 %v302
      %v304 = vpop.xlane.xlu0 %303
      %v305 = vadd.f32 %v300, %v304
      %vm306 = vcmask 3072
      %307 = vst.msk [vmem:[%s216] sm:$0xf] %vm306, %v305
      %p308 = scmp.lt.s32.totalorder %s19, 0
      %s309 = scalar_select %p308, %s19, 0
      %p310 = scmp.lt.s32.totalorder %s20, 1
      %s311 = scalar_select %p310, %s20, 1
      %s312 = smul.addr %s309, 2
      %s313 = sadd.s32 %s311, %s312
      %s314 = smul.addr %s313, 4
      %s315 = scalar_lea.vmem %s1, %s314
      %p316 = scmp.lt.s32.totalorder %s19, 0
      %s317 = scalar_select %p316, %s19, 0
      %p318 = scmp.lt.s32.totalorder %s20, 1
      %s319 = scalar_select %p318, %s20, 1
      %s320 = smul.addr %s317, 2
      %s321 = sadd.s32 %s319, %s320
      %s322 = smul.addr %s321, 4
      %s323 = scalar_lea.vmem %s2, %s322
      // Predicated region
      $region29: #{spatial_gcn.2} parent=23 // pred_check
        %p324 = pneg %p85
      $region30: #{spatial_gcn.2} parent=23 // pred_check_branch
        %326 = sbr.rel (%p324) target = $region32
      $region31: #{spatial_gcn.2} parent=23 // pred_region
        _
      $region32: #{spatial_gcn.2} parent=23 // pred_fallthru
        _
      // Predicated region
      $region33: #{spatial_gcn.2} parent=23 // pred_check
        %p327 = pneg %p113
      $region34: #{spatial_gcn.2} parent=23 // pred_check_branch
        %329 = sbr.rel (%p327) target = $region36
      $region35: #{spatial_gcn.2} parent=23 // pred_region
        _
      $region36: #{spatial_gcn.2} parent=23 // pred_fallthru
        _
    $region24: #{spatial_gcn.2} parent=5 // pred_fallthru
      _
    %p330 = scmp.le.s32.totalorder 2, %s9
    // Predicated region
    $region37: #{spatial_gcn.2} parent=5 // pred_check
      %p331 = pneg %p330
    $region38: #{spatial_gcn.2} parent=5 // pred_check_branch
      %333 = sbr.rel (%p331) target = $region40
    $region39: #{spatial_gcn.2} parent=5 // pred_region
      %s334 = ssub.s32 %s9, 2
      // Predicated region
      $region41: #{spatial_gcn.2} parent=39 // pred_check
        %p335 = pneg %p91
      $region42: #{spatial_gcn.2} parent=39 // pred_check_branch
        %337 = sbr.rel (%p335) target = $region44
      $region43: #{spatial_gcn.2} parent=39 // pred_region
        %p338 = scmp.lt.s32.totalorder %s22, 0
        %s339 = scalar_select %p338, %s22, 0
        %p340 = scmp.lt.s32.totalorder %s23, 1
        %s341 = scalar_select %p340, %s23, 1
        %s342 = smul.addr %s339, 2
        %s343 = sadd.s32 %s341, %s342
        %s344 = smul.addr %s343, 4
        %s345 = scalar_lea.vmem %s1, %s344
      $region44: #{spatial_gcn.2} parent=39 // pred_fallthru
        _
      // Predicated region
      $region45: #{spatial_gcn.2} parent=39 // pred_check
        %p346 = pneg %p119
      $region46: #{spatial_gcn.2} parent=39 // pred_check_branch
        %348 = sbr.rel (%p346) target = $region48
      $region47: #{spatial_gcn.2} parent=39 // pred_region
        %p349 = scmp.lt.s32.totalorder %s22, 0
        %s350 = scalar_select %p349, %s22, 0
        %p351 = scmp.lt.s32.totalorder %s23, 1
        %s352 = scalar_select %p351, %s23, 1
        %s353 = smul.addr %s350, 2
        %s354 = sadd.s32 %s352, %s353
        %s355 = smul.addr %s354, 4
        %s356 = scalar_lea.vmem %s2, %s355
      $region48: #{spatial_gcn.2} parent=39 // pred_fallthru
        _
    $region40: #{spatial_gcn.2} parent=5 // pred_fallthru
      _
  $region6: #{spatial_gcn.2} parent=0 // loop_footer
    %s13 = sadd.s32 1, %s9
  $region7: #{spatial_gcn.2} parent=0 // loop_footer_branch
    %8 = sbr.rel target = $region3
  $region8: #{spatial_gcn.2} parent=0 // loop_exit
    _

// kernel: spatial_gcn.3
$region0: #{spatial_gcn.3}
  #allocation0 [shape = 'u32[]', space=smem, size = 0x4, offset = 0x4, fixed_abs, tag = 'smem constant byte address 0x4 - core index']
  #allocation1 [shape = 'u32[144,128]{1,0:T(1,128)}', space=vmem, size = 0x12000, scoped, tag = 'internal scratch']
  %s0 = inlined_call_operand.vmem [shape: f32[2,4,256], index: 0, kind: input, shape index: {}]
  %s1 = inlined_call_operand.vmem [shape: f32[2,4,4], index: 1, kind: input, shape index: {}]
  %s2 = inlined_call_operand.vmem [shape: f32[2,4,1], index: 2, kind: input, shape index: {}]
  %s3 = inlined_call_operand.vmem [shape: f32[2,4,256], index: 3, kind: output, shape index: {}]
  %s4 = sld [smem:[#allocation0]]
  $region45: #{spatial_gcn.3} parent=0
    _
  %s6 = ssub.s32 1, %s4
  %s7 = scalar_select 0, %s6, %s4
  loop: start=0, step=1, limit=6
  $region2: #{spatial_gcn.3} parent=0 // loop_pre_header
    _
  $region3: #{spatial_gcn.3} parent=0 // loop_header
    %s9 = sphi 0, %s13
    %p10 = scmp.ge.s32.totalorder %s9, 6
    %s16 = sphi 0, %s28
    %s17 = sphi 0, %s24
    %s18 = sphi 0, %s16
    %s19 = sphi 0, %s17
    %s20 = sphi 0, %s18
    %s21 = sphi 0, %s19
    %s33 = sphi 0, %s35
    %s36 = sphi 0, %s33
    %s37 = sphi 0, %s36
    %s53 = sphi 0, %s37
    %s59 = sphi 0, %s61
    %s62 = sphi 0, %s59
    %s63 = sphi 0, %s62
    %s79 = sphi 0, %s63
    %s85 = sphi 0, %s87
    %s88 = sphi 0, %s85
    %s89 = sphi 0, %s88
    %s105 = sphi 0, %s89
    %s113 = sphi 0, %s115
    %s116 = sphi 0, %s113
    %s117 = sphi 0, %s116
    %s133 = sphi 0, %s117
  $region4: #{spatial_gcn.3} parent=0 // loop_header_branch
    %12 = sbr.rel (%p10) target = $region8
  $region5: #{spatial_gcn.3} parent=0 // loop_body
    %s14 = ssub.s32 %s9, 1
    %s15 = ssub.s32 %s9, 2
    %s22 = sadd.s32 1, %s17
    %p23 = scmp.ge.s32.totalorder %s22, 2
    %s24 = scalar_select %p23, 0, %s22
    %s25 = sadd.s32 1, %s16
    %s26 = scalar_select %p23, %s25, %s16
    %p27 = scmp.ge.s32.totalorder %s26, 2
    %s28 = scalar_select %p27, 0, %s26
    %s29 = ssub.s32 %s16, %s28
    %s30 = ssub.s32 %s17, %s24
    %s31 = sor.u32 %s29, %s30
    %p32 = scmp.eq.s32.totalorder %s31, 0
    %s34 = sadd.s32 %s33, 1
    %s35 = scalar_select %p32, %s33, %s34
    %p38 = pneg %p32
    %p39 = scmp.eq.s32.totalorder %s9, 3
    %p40 = por %p38, %p39
    %p41 = scmp.ne.s32.totalorder %s33, %s36
    %p42 = scmp.eq.s32.totalorder %s9, 0
    %p43 = por %p41, %p42
    %p44 = scmp.ne.s32.totalorder %s33, %s36
    %p45 = scmp.eq.s32.totalorder %s14, 3
    %p46 = por %p44, %p45
    %p47 = scmp.ne.s32.totalorder %s36, %s37
    %p48 = scmp.eq.s32.totalorder %s14, 0
    %p49 = por %p47, %p48
    %p50 = scmp.ne.s32.totalorder %s36, %s37
    %p51 = scmp.eq.s32.totalorder %s15, 3
    %p52 = por %p50, %p51
    %p54 = scmp.ne.s32.totalorder %s37, %s53
    %p55 = scmp.eq.s32.totalorder %s15, 0
    %p56 = por %p54, %p55
    %s57 = ssub.s32 %s16, %s28
    %p58 = scmp.eq.s32.totalorder %s57, 0
    %s60 = sadd.s32 %s59, 1
    %s61 = scalar_select %p58, %s59, %s60
    %p64 = pneg %p58
    %p65 = scmp.eq.s32.totalorder %s9, 3
    %p66 = por %p64, %p65
    %p67 = scmp.ne.s32.totalorder %s59, %s62
    %p68 = scmp.eq.s32.totalorder %s9, 0
    %p69 = por %p67, %p68
    %p70 = scmp.ne.s32.totalorder %s59, %s62
    %p71 = scmp.eq.s32.totalorder %s14, 3
    %p72 = por %p70, %p71
    %p73 = scmp.ne.s32.totalorder %s62, %s63
    %p74 = scmp.eq.s32.totalorder %s14, 0
    %p75 = por %p73, %p74
    %p76 = scmp.ne.s32.totalorder %s62, %s63
    %p77 = scmp.eq.s32.totalorder %s15, 3
    %p78 = por %p76, %p77
    %p80 = scmp.ne.s32.totalorder %s63, %s79
    %p81 = scmp.eq.s32.totalorder %s15, 0
    %p82 = por %p80, %p81
    %s83 = ssub.s32 %s16, %s28
    %p84 = scmp.eq.s32.totalorder %s83, 0
    %s86 = sadd.s32 %s85, 1
    %s87 = scalar_select %p84, %s85, %s86
    %p90 = pneg %p84
    %p91 = scmp.eq.s32.totalorder %s9, 3
    %p92 = por %p90, %p91
    %p93 = scmp.ne.s32.totalorder %s85, %s88
    %p94 = scmp.eq.s32.totalorder %s9, 0
    %p95 = por %p93, %p94
    %p96 = scmp.ne.s32.totalorder %s85, %s88
    %p97 = scmp.eq.s32.totalorder %s14, 3
    %p98 = por %p96, %p97
    %p99 = scmp.ne.s32.totalorder %s88, %s89
    %p100 = scmp.eq.s32.totalorder %s14, 0
    %p101 = por %p99, %p100
    %p102 = scmp.ne.s32.totalorder %s88, %s89
    %p103 = scmp.eq.s32.totalorder %s15, 3
    %p104 = por %p102, %p103
    %p106 = scmp.ne.s32.totalorder %s89, %s105
    %p107 = scmp.eq.s32.totalorder %s15, 0
    %p108 = por %p106, %p107
    %s109 = ssub.s32 %s16, %s28
    %s110 = ssub.s32 %s17, %s24
    %s111 = sor.u32 %s109, %s110
    %p112 = scmp.eq.s32.totalorder %s111, 0
    %s114 = sadd.s32 %s113, 1
    %s115 = scalar_select %p112, %s113, %s114
    %p118 = pneg %p112
    %p119 = scmp.eq.s32.totalorder %s9, 3
    %p120 = por %p118, %p119
    %p121 = scmp.ne.s32.totalorder %s113, %s116
    %p122 = scmp.eq.s32.totalorder %s9, 0
    %p123 = por %p121, %p122
    %p124 = scmp.ne.s32.totalorder %s113, %s116
    %p125 = scmp.eq.s32.totalorder %s14, 3
    %p126 = por %p124, %p125
    %p127 = scmp.ne.s32.totalorder %s116, %s117
    %p128 = scmp.eq.s32.totalorder %s14, 0
    %p129 = por %p127, %p128
    %p130 = scmp.ne.s32.totalorder %s116, %s117
    %p131 = scmp.eq.s32.totalorder %s15, 3
    %p132 = por %p130, %p131
    %p134 = scmp.ne.s32.totalorder %s117, %s133
    %p135 = scmp.eq.s32.totalorder %s15, 0
    %p136 = por %p134, %p135
    %p137 = scmp.le.s32.totalorder 1, %s9
    %p138 = scmp.lt.s32.totalorder %s9, 5
    %p139 = pnand %p137, %p138
    %p140 = pneg %p139
    // Predicated region
    $region9: #{spatial_gcn.3} parent=5 // pred_check
      _
    $region10: #{spatial_gcn.3} parent=5 // pred_check_branch
      %142 = sbr.rel (%p139) target = $region12
    $region11: #{spatial_gcn.3} parent=5 // pred_region
      %s143 = ssub.s32 %s9, 1
    $region12: #{spatial_gcn.3} parent=5 // pred_fallthru
      _
    %p144 = scmp.lt.s32.totalorder %s9, 4
    // Predicated region
    $region13: #{spatial_gcn.3} parent=5 // pred_check
      %p145 = pneg %p144
    $region14: #{spatial_gcn.3} parent=5 // pred_check_branch
      %147 = sbr.rel (%p145) target = $region16
    $region15: #{spatial_gcn.3} parent=5 // pred_region
      // Predicated region
      $region17: #{spatial_gcn.3} parent=15 // pred_check
        %p148 = pneg %p43
      $region18: #{spatial_gcn.3} parent=15 // pred_check_branch
        %150 = sbr.rel (%p148) target = $region20
      $region19: #{spatial_gcn.3} parent=15 // pred_region
        %p151 = scmp.lt.s32.totalorder %s16, 1
        %s152 = scalar_select %p151, %s16, 1
        %p153 = scmp.lt.s32.totalorder %s17, 1
        %s154 = scalar_select %p153, %s17, 1
        %s155 = smul.addr %s152, 2
        %s156 = sadd.s32 %s154, %s155
        %s157 = smul.addr %s156, 4
        %s158 = scalar_lea.vmem %s0, %s157
      $region20: #{spatial_gcn.3} parent=15 // pred_fallthru
        _
      // Predicated region
      $region21: #{spatial_gcn.3} parent=15 // pred_check
        %p159 = pneg %p69
      $region22: #{spatial_gcn.3} parent=15 // pred_check_branch
        %161 = sbr.rel (%p159) target = $region24
      $region23: #{spatial_gcn.3} parent=15 // pred_region
        %p162 = scmp.lt.s32.totalorder %s16, 1
        %s163 = scalar_select %p162, %s16, 1
        %s164 = smul.addr %s163, 4
        %s165 = scalar_lea.vmem %s1, %s164
      $region24: #{spatial_gcn.3} parent=15 // pred_fallthru
        _
      // Predicated region
      $region25: #{spatial_gcn.3} parent=15 // pred_check
        %p166 = pneg %p95
      $region26: #{spatial_gcn.3} parent=15 // pred_check_branch
        %168 = sbr.rel (%p166) target = $region28
      $region27: #{spatial_gcn.3} parent=15 // pred_region
        %p169 = scmp.lt.s32.totalorder %s16, 1
        %s170 = scalar_select %p169, %s16, 1
        %s171 = smul.addr %s170, 4
        %s172 = scalar_lea.vmem %s2, %s171
      $region28: #{spatial_gcn.3} parent=15 // pred_fallthru
        _
    $region16: #{spatial_gcn.3} parent=5 // pred_fallthru
      _
    %p173 = scmp.le.s32.totalorder 1, %s9
    %p174 = scmp.lt.s32.totalorder %s9, 5
    %p175 = pnand %p173, %p174
    %p176 = pneg %p175
    // Predicated region
    $region29: #{spatial_gcn.3} parent=5 // pred_check
      _
    $region30: #{spatial_gcn.3} parent=5 // pred_check_branch
      %178 = sbr.rel (%p175) target = $region32
    $region31: #{spatial_gcn.3} parent=5 // pred_region
      %s179 = ssub.s32 %s9, 1
      %p180 = scmp.lt.s32.totalorder %s18, 1
      %s181 = scalar_select %p180, %s18, 1
      %p182 = scmp.lt.s32.totalorder %s19, 1
      %s183 = scalar_select %p182, %s19, 1
      %s184 = smul.addr %s181, 2
      %s185 = sadd.s32 %s183, %s184
      %s186 = smul.addr %s185, 4
      %s187 = scalar_lea.vmem %s0, %s186
      %p188 = pneg %p49
      %p189 = pneg %p46
      %p190 = scmp.lt.s32.totalorder %s18, 1
      %s191 = scalar_select %p190, %s18, 1
      %s192 = smul.addr %s191, 4
      %s193 = scalar_lea.vmem %s1, %s192
      %p194 = pneg %p75
      %p195 = pneg %p72
      %p196 = scmp.lt.s32.totalorder %s18, 1
      %s197 = scalar_select %p196, %s18, 1
      %s198 = smul.addr %s197, 4
      %s199 = scalar_lea.vmem %s2, %s198
      %p200 = pneg %p101
      %p201 = pneg %p98
      %p202 = pneg %p129
      %p203 = pneg %p126
      %p204 = scmp.lt.s32.totalorder %s18, 1
      %s205 = scalar_select %p204, %s18, 1
      %p206 = scmp.lt.s32.totalorder %s19, 1
      %s207 = scalar_select %p206, %s19, 1
      %s208 = smul.addr %s205, 2
      %s209 = sadd.s32 %s207, %s208
      %s210 = smul.addr %s209, 4
      %s211 = scalar_lea.vmem %s3, %s210
      %p212 = scmp.lt.s32.totalorder %s18, 1
      %s213 = scalar_select %p212, %s18, 1
      %p214 = scmp.lt.s32.totalorder %s19, 1
      %s215 = scalar_select %p214, %s19, 1
      %s216 = smul.addr %s213, 2
      %s217 = sadd.s32 %s215, %s216
      %s218 = smul.addr %s217, 4
      %s219 = scalar_lea.vmem %s0, %s218
      %p220 = scmp.lt.s32.totalorder %s18, 1
      %s221 = scalar_select %p220, %s18, 1
      %s222 = smul.addr %s221, 4
      %s223 = scalar_lea.vmem %s1, %s222
      %p224 = scmp.lt.s32.totalorder %s18, 1
      %s225 = scalar_select %p224, %s18, 1
      %s226 = smul.addr %s225, 4
      %s227 = scalar_lea.vmem %s2, %s226
      %p228 = scmp.lt.s32.totalorder %s18, 1
      %s229 = scalar_select %p228, %s18, 1
      %p230 = scmp.lt.s32.totalorder %s19, 1
      %s231 = scalar_select %p230, %s19, 1
      %s232 = smul.addr %s229, 2
      %s233 = sadd.s32 %s231, %s232
      %s234 = smul.addr %s233, 4
      %s235 = scalar_lea.vmem %s3, %s234
      %v236 = vld [vmem:[%s223] sm:$0xf]
      %v237 = vld [vmem:[%s219] sm:$0xf]
      %v238 = vld [vmem:[%s227] sm:$0xf]
      %240 = vset.pattern.permute.xlu0 0
      %241 = vperm.xlu0 %240, %v238
      %v242 = vpop.permute.xlu0 %241
      %vm244 = vcmask 31744
      %v246 = vsel %vm244, %v236, 0
      %vm248 = vcmask 1043456
      %v250 = vsel %vm248, %v237, 0
      %252 = vmatprep.subr.mxu0 0.0
      %253 = vmatpush1.msra.mxu0 %v250
      %254 = vmatprep.subr.mxu0 0.0
      %255 = vmatpush1.msra.mxu0 0.0
      %256 = vmatprep.subr.mxu0 0.0
      %257 = vmatpush1.msra.mxu0 0.0
      %258 = vmatprep.subr.mxu0 0.0
      %259 = vmatpush1.msra.mxu0 0.0
      %260 = vmatprep.subr.mxu0 0.0
      %261 = vmatpush1.msra.mxu0 0.0
      %262 = vmatprep.subr.mxu0 0.0
      %263 = vmatpush1.msra.mxu0 0.0
      %264 = vmatprep.subr.mxu0 0.0
      %265 = vmatpush1.msra.mxu0 0.0
      %266 = vmatprep.subr.mxu0 0.0
      %267 = vmatpush1.msra.mxu0 0.0
      %268 = vmatprep.subr.mxu0 0.0
      %269 = vmatpush1.msra.mxu0 0.0
      %270 = vmatprep.subr.mxu0 0.0
      %271 = vmatpush1.msra.mxu0 0.0
      %272 = vmatprep.subr.mxu0 0.0
      %273 = vmatpush1.msra.mxu0 0.0
      %274 = vmatprep.subr.mxu0 0.0
      %275 = vmatpush1.msra.mxu0 0.0
      %276 = vmatprep.subr.mxu0 0.0
      %277 = vmatpush1.msra.mxu0 0.0
      %278 = vmatprep.subr.mxu0 0.0
      %279 = vmatpush1.msra.mxu0 0.0
      %280 = vmatprep.subr.mxu0 0.0
      %281 = vmatpush1.msra.mxu0 0.0
      %282 = vmatprep.subr.mxu0 0.0
      %283 = vmatpush1.msra.mxu0 0.0
      %284 = vmatprep.subr.mxu0 0.0
      %285 = vmatpush1.msra.mxu0 0.0
      %286 = vmatprep.subr.mxu0 0.0
      %287 = vmatpush1.msra.mxu0 0.0
      %288 = vmatprep.subr.mxu0 0.0
      %289 = vmatpush1.msra.mxu0 0.0
      %290 = vmatprep.subr.mxu0 0.0
      %291 = vmatpush1.msra.mxu0 0.0
      %292 = vmatprep.subr.mxu0 0.0
      %293 = vmatpush1.msra.mxu0 0.0
      %294 = vmatprep.subr.mxu0 0.0
      %295 = vmatpush1.msra.mxu0 0.0
      %296 = vmatprep.subr.mxu0 0.0
      %297 = vmatpush1.msra.mxu0 0.0
      %298 = vmatprep.subr.mxu0 0.0
      %299 = vmatpush1.msra.mxu0 0.0
      %300 = vmatprep.subr.mxu0 0.0
      %301 = vmatpush1.msra.mxu0 0.0
      %302 = vmatprep.subr.mxu0 0.0
      %303 = vmatpush1.msra.mxu0 0.0
      %304 = vmatprep.subr.mxu0 0.0
      %305 = vmatpush1.msra.mxu0 0.0
      %306 = vmatprep.subr.mxu0 0.0
      %307 = vmatpush1.msra.mxu0 0.0
      %308 = vmatprep.subr.mxu0 0.0
      %309 = vmatpush1.msra.mxu0 0.0
      %310 = vmatprep.subr.mxu0 0.0
      %311 = vmatpush1.msra.mxu0 0.0
      %312 = vmatprep.subr.mxu0 0.0
      %313 = vmatpush1.msra.mxu0 0.0
      %314 = vmatprep.subr.mxu0 0.0
      %315 = vmatpush1.msra.mxu0 0.0
      %316 = vmatprep.mubr.f32.mxu0 0.0
      %317 = vmatmul.mubr.f32.gmra.mrb[0].mxu0 %v246
      %v318 = vpop.f32.mrb[0].mxu0
      %v319 = vadd.f32 %v242, %v318
      %v320 = vpop.f32.mrb[0].mxu0
      %321 = vdwg.mxu0
      %v322 = vmax.f32 %v319, 0.0
      %323 = vst [vmem:[%s235] sm:$0xf] %v322
      %p324 = scmp.lt.s32.totalorder %s18, 1
      %s325 = scalar_select %p324, %s18, 1
      %p326 = scmp.lt.s32.totalorder %s19, 1
      %s327 = scalar_select %p326, %s19, 1
      %s328 = smul.addr %s325, 2
      %s329 = sadd.s32 %s327, %s328
      %s330 = smul.addr %s329, 4
      %s331 = scalar_lea.vmem %s3, %s330
      // Predicated region
      $region33: #{spatial_gcn.3} parent=31 // pred_check
        %p332 = pneg %p126
      $region34: #{spatial_gcn.3} parent=31 // pred_check_branch
        %334 = sbr.rel (%p332) target = $region36
      $region35: #{spatial_gcn.3} parent=31 // pred_region
        _
      $region36: #{spatial_gcn.3} parent=31 // pred_fallthru
        _
    $region32: #{spatial_gcn.3} parent=5 // pred_fallthru
      _
    %p335 = scmp.le.s32.totalorder 2, %s9
    // Predicated region
    $region37: #{spatial_gcn.3} parent=5 // pred_check
      %p336 = pneg %p335
    $region38: #{spatial_gcn.3} parent=5 // pred_check_branch
      %338 = sbr.rel (%p336) target = $region40
    $region39: #{spatial_gcn.3} parent=5 // pred_region
      %s339 = ssub.s32 %s9, 2
      // Predicated region
      $region41: #{spatial_gcn.3} parent=39 // pred_check
        %p340 = pneg %p132
      $region42: #{spatial_gcn.3} parent=39 // pred_check_branch
        %342 = sbr.rel (%p340) target = $region44
      $region43: #{spatial_gcn.3} parent=39 // pred_region
        %p343 = scmp.lt.s32.totalorder %s20, 1
        %s344 = scalar_select %p343, %s20, 1
        %p345 = scmp.lt.s32.totalorder %s21, 1
        %s346 = scalar_select %p345, %s21, 1
        %s347 = smul.addr %s344, 2
        %s348 = sadd.s32 %s346, %s347
        %s349 = smul.addr %s348, 4
        %s350 = scalar_lea.vmem %s3, %s349
      $region44: #{spatial_gcn.3} parent=39 // pred_fallthru
        _
    $region40: #{spatial_gcn.3} parent=5 // pred_fallthru
      _
  $region6: #{spatial_gcn.3} parent=0 // loop_footer
    %s13 = sadd.s32 1, %s9
  $region7: #{spatial_gcn.3} parent=0 // loop_footer_branch
    %8 = sbr.rel target = $region3
  $region8: #{spatial_gcn.3} parent=0 // loop_exit
    _

</llo_original>
